<compile_context>
chip_gen: v6e
topology: v6e:2x2x1
jax: 0.10.0
libtpu: 0.0.40
codegen_flags: <defaults>
</compile_context>

<pallas_src>
import functools

import jax
import jax.numpy as jnp
from jax import lax
from jax.experimental import pallas as pl
from jax.experimental.pallas import tpu as pltpu

BN_EPS = 1e-5


def _round_up(v: int, m: int) -> int:
    return ((v + m - 1) // m) * m


# -----------------------------------------------------------------------------
# Pass 1: h = x @ W1 (bf16 MXU, f32 accumulate) + fused per-tile BN statistics.
# Stats are computed from the f32 accumulator, then h is stored as bf16.
# -----------------------------------------------------------------------------
def _linear1_stats_kernel(x_ref, w1_ref, h_ref, sum_ref, sumsq_ref):
    h = jnp.dot(x_ref[...].astype(w1_ref.dtype), w1_ref[...],
                preferred_element_type=jnp.float32)
    # Per-feature partial sums for this batch tile (f32, pre-rounding).
    sum_ref[0] = jnp.sum(h, axis=0, keepdims=True)        # (1, H)
    sumsq_ref[0] = jnp.sum(h * h, axis=0, keepdims=True)  # (1, H)
    h_ref[...] = h.astype(h_ref.dtype)                    # bf16 store


# -----------------------------------------------------------------------------
# Pass 2: folded BatchNorm (per-feature scale/shift) + ReLU + Linear-2.
# Elementwise math stays f32 (safe on v5e: no bf16 VALU there).
# -----------------------------------------------------------------------------
def _bn_relu_linear2_kernel(h_ref, scale_ref, shift_ref, w2_ref, o_ref):
    a = jnp.maximum(h_ref[...] * scale_ref[...] + shift_ref[...], 0.0)
    o_ref[...] = jnp.dot(a.astype(w2_ref.dtype), w2_ref[...],
                         preferred_element_type=jnp.float32)


def projection_head(x, w1_t, gamma, beta, w2_t, *,
                    tile_m: int = 512,
                    compute_dtype=jnp.bfloat16):
    """ProjectionHead forward (training-mode BatchNorm semantics).

    x     : (B, D_in)   float32 (cast to compute_dtype inside the kernel)
    w1_t  : (D_in, H)   pre-transposed Linear-1 weight (ideally pre-cast bf16)
    gamma : (H,)        BatchNorm weight
    beta  : (H,)        BatchNorm bias
    w2_t  : (H, D_out)  pre-transposed Linear-2 weight (ideally pre-cast bf16)
    """
    B, d_in = x.shape
    hidden = w1_t.shape[1]
    d_out = w2_t.shape[1]

    # Weights feed the MXU in compute_dtype. Pre-cast once outside the jitted
    # hot loop if possible; only cast here when the caller didn't.
    w1_c = w1_t if w1_t.dtype == compute_dtype else w1_t.astype(compute_dtype)
    w2_c = w2_t if w2_t.dtype == compute_dtype else w2_t.astype(compute_dtype)

    # Batch tiling: multiples of 16 rows (bf16 packs two rows per sublane).
    # Zero-padded rows give h == 0 (there is no Linear-1 bias), so they add
    # nothing to the partial sums; the BN stats divide by the *real* B.
    row_align = 16
    tm = min(_round_up(tile_m, row_align), _round_up(B, row_align))
    b_pad = _round_up(B, tm)
    n_tiles = b_pad // tm
    if b_pad != B:
        x = jnp.pad(x, ((0, b_pad - B), (0, 0)))

    cparams = pltpu.CompilerParams(
        dimension_semantics=("parallel",),
        vmem_limit_bytes=48 * 1024 * 1024,   # fits v7x's 64 MiB physical VMEM
    )
    resident = pl.Buffered(1)  # constant index_map -> single buffer is enough

    # ---- Pass 1: matmul-1 + fused per-tile BN statistics ----
    h, tile_sums, tile_sumsqs = pl.pallas_call(
        _linear1_stats_kernel,
        grid=(n_tiles,),
        in_specs=[
            pl.BlockSpec((tm, d_in), lambda i: (i, 0)),        # x row-tile (f32)
            pl.BlockSpec((d_in, hidden), lambda i: (0, 0),
                         pipeline_mode=resident),               # W1, resident
        ],
        out_specs=(
            pl.BlockSpec((tm, hidden), lambda i: (i, 0)),       # h (bf16)
            pl.BlockSpec((1, 1, hidden), lambda i: (i, 0, 0)),  # per-tile sum
            pl.BlockSpec((1, 1, hidden), lambda i: (i, 0, 0)),  # per-tile sumsq
        ),
        out_shape=(
            jax.ShapeDtypeStruct((b_pad, hidden), compute_dtype),
            jax.ShapeDtypeStruct((n_tiles, 1, hidden), jnp.float32),
            jax.ShapeDtypeStruct((n_tiles, 1, hidden), jnp.float32),
        ),
        compiler_params=cparams,
    )(x, w1_c)

    # ---- Fold training-mode BatchNorm into one per-feature scale & shift ----
    total = jnp.sum(tile_sums[:, 0, :], axis=0)        # (H,)
    total_sq = jnp.sum(tile_sumsqs[:, 0, :], axis=0)   # (H,)
    inv_b = jnp.float32(1.0 / B)
    mean = total * inv_b
    var = jnp.maximum(total_sq * inv_b - mean * mean, 0.0)   # biased variance
    scale = gamma.astype(jnp.float32) * lax.rsqrt(var + BN_EPS)
    shift = beta.astype(jnp.float32) - mean * scale
    scale_row = scale.reshape(1, hidden)
    shift_row = shift.reshape(1, hidden)

    # ---- Pass 2: scale/shift + ReLU + matmul-2 ----
    # Pass 2 is HBM-bound with little MXU work; use a bigger row tile than
    # pass 1 (largest of 4x/2x/1x that still divides the padded batch).
    mult = 4 if n_tiles % 4 == 0 else (2 if n_tiles % 2 == 0 else 1)
    tm2 = tm * mult
    n_tiles2 = n_tiles // mult

    out = pl.pallas_call(
        _bn_relu_linear2_kernel,
        grid=(n_tiles2,),
        in_specs=[
            pl.BlockSpec((tm2, hidden), lambda i: (i, 0)),      # bf16 h row-tile
            pl.BlockSpec((1, hidden), lambda i: (0, 0),
                         pipeline_mode=resident),                # scale, resident
            pl.BlockSpec((1, hidden), lambda i: (0, 0),
                         pipeline_mode=resident),                # shift, resident
            pl.BlockSpec((hidden, d_out), lambda i: (0, 0),
                         pipeline_mode=resident),                # W2, resident
        ],
        out_specs=pl.BlockSpec((tm2, d_out), lambda i: (i, 0)),
        out_shape=jax.ShapeDtypeStruct((b_pad, d_out), jnp.float32),
        compiler_params=cparams,
    )(h, scale_row, shift_row, w2_c)

    return out[:B]


# -----------------------------------------------------------------------------
# References
# -----------------------------------------------------------------------------
def reference_torch_train(x, w1, b1, gamma, beta, w2):
    """Exact f32 nn.Sequential forward (train-mode BatchNorm), incl. Linear-1 bias."""
    h = jnp.dot(x, w1.T, precision=lax.Precision.HIGHEST) + b1
    mean = jnp.mean(h, axis=0)
    var = jnp.mean((h - mean) ** 2, axis=0)        # biased, as BN uses in fwd
    a = jnp.maximum(gamma * (h - mean) * lax.rsqrt(var + BN_EPS) + beta, 0.0)
    return jnp.dot(a, w2.T, precision=lax.Precision.HIGHEST)


def reference_matched(x, w1_c, gamma, beta, w2_c, compute_dtype=jnp.bfloat16):
    """Reference with the kernel's precision choices (bf16 MXU, f32 acc, bf16 h)."""
    h = jnp.dot(x.astype(compute_dtype), w1_c.astype(compute_dtype),
                preferred_element_type=jnp.float32)
    mean = jnp.mean(h, axis=0)
    var = jnp.maximum(jnp.mean(h * h, axis=0) - mean * mean, 0.0)
    scale = gamma * lax.rsqrt(var + BN_EPS)
    shift = beta - mean * scale
    h_lp = h.astype(compute_dtype)                       # h stored as bf16
    a = jnp.maximum(h_lp.astype(jnp.float32) * scale + shift, 0.0)
    return jnp.dot(a.astype(compute_dtype), w2_c.astype(compute_dtype),
                   preferred_element_type=jnp.float32)


if __name__ == "__main__":
    # Small shapes consistent with the module (defaults 2048/2048/128 shrunk),
    # chosen so the batch spans multiple pass-1 tiles and exercises both the
    # cross-tile BN-statistics reduction and the larger pass-2 tile.
    B, D_IN, HIDDEN, D_OUT = 128, 256, 256, 128

    key = jax.random.PRNGKey(0)
    kx, kw1, kb1, kw2 = jax.random.split(key, 4)

    x = jax.random.normal(kx, (B, D_IN), dtype=jnp.float32)

    # PyTorch-style Linear init: U(-1/sqrt(fan_in), 1/sqrt(fan_in)).
    bound1 = 1.0 / (D_IN ** 0.5)
    w1 = jax.random.uniform(kw1, (HIDDEN, D_IN), minval=-bound1, maxval=bound1,
                            dtype=jnp.float32)
    b1 = jax.random.uniform(kb1, (HIDDEN,), minval=-bound1, maxval=bound1,
                            dtype=jnp.float32)
    bound2 = 1.0 / (HIDDEN ** 0.5)
    w2 = jax.random.uniform(kw2, (D_OUT, HIDDEN), minval=-bound2, maxval=bound2,
                            dtype=jnp.float32)

    # BatchNorm1d default init: weight=1, bias=0.
    gamma = jnp.ones((HIDDEN,), jnp.float32)
    beta = jnp.zeros((HIDDEN,), jnp.float32)

    # Pre-transpose and pre-cast the weights ONCE, outside the jitted forward
    # (avoids a per-call f32->bf16 cast of the large weight matrices).
    w1_t = w1.T.astype(jnp.bfloat16)    # (D_IN, HIDDEN)
    w2_t = w2.T.astype(jnp.bfloat16)    # (HIDDEN, D_OUT)

    fwd = jax.jit(functools.partial(projection_head, tile_m=64))
    out = jax.block_until_ready(fwd(x, w1_t, gamma, beta, w2_t))
    assert out.shape == (B, D_OUT)

    # Tight check vs a reference with matching precision choices.
    ref_m = reference_matched(x, w1_t, gamma, beta, w2_t)
    assert jnp.allclose(out, ref_m, atol=1e-3, rtol=1e-3), (
        "mismatch vs matched-precision reference, max abs diff = "
        f"{jnp.max(jnp.abs(out - ref_m))}")

    # Loose check vs the exact f32 PyTorch train-mode forward (including the
    # Linear-1 bias, which training-mode BatchNorm cancels exactly). Tolerance
    # covers bf16 MXU inputs + bf16 storage of h.
    ref_f = reference_torch_train(x, w1, b1, gamma, beta, w2)
    assert jnp.allclose(out, ref_f, atol=6e-2, rtol=6e-2), (
        "mismatch vs f32 PyTorch-semantics reference, max abs diff = "
        f"{jnp.max(jnp.abs(out - ref_f))}")

    print("KERNEL_OK")
</pallas_src>

<mosaic_0001>
module attributes {stable_mosaic.version = 11 : i64} {
  func.func @_bn_relu_linear2_kernel(%arg0: i32, %arg1: memref<128x256xbf16, #tpu.memory_space<vmem>>, %arg2: memref<1x256xf32, #tpu.memory_space<vmem>>, %arg3: memref<1x256xf32, #tpu.memory_space<vmem>>, %arg4: memref<256x128xbf16, #tpu.memory_space<vmem>>, %arg5: memref<128x128xf32, #tpu.memory_space<vmem>>) attributes {dimension_semantics = [#tpu.dimension_semantics<parallel>], iteration_bounds = array<i64: 1>, scalar_prefetch = 0 : i64, scratch_operands = 0 : i64, tpu.core_type = #tpu.core_type<tc>, window_params = [{transform_indices = @transform_0, window_bounds = array<i64: 128, 256>}, {pipeline_mode = #tpu.pipeline_mode<synchronous>, transform_indices = @transform_1, window_bounds = array<i64: 1, 256>}, {pipeline_mode = #tpu.pipeline_mode<synchronous>, transform_indices = @transform_2, window_bounds = array<i64: 1, 256>}, {pipeline_mode = #tpu.pipeline_mode<synchronous>, transform_indices = @transform_3, window_bounds = array<i64: 256, 128>}, {transform_indices = @transform_4, window_bounds = array<i64: 128, 128>}]} {
    %c0 = arith.constant 0 : index
    %c0_0 = arith.constant 0 : index
    %0 = vector.load %arg1[%c0, %c0_0] : memref<128x256xbf16, #tpu.memory_space<vmem>>, vector<128x256xbf16>
    %c0_1 = arith.constant 0 : index
    %c0_2 = arith.constant 0 : index
    %1 = vector.load %arg2[%c0_1, %c0_2] : memref<1x256xf32, #tpu.memory_space<vmem>>, vector<1x256xf32>
    %2 = arith.extf %0 : vector<128x256xbf16> to vector<128x256xf32>
    %3 = vector.broadcast %1 : vector<1x256xf32> to vector<128x256xf32>
    %4 = arith.mulf %2, %3 : vector<128x256xf32>
    %c0_3 = arith.constant 0 : index
    %c0_4 = arith.constant 0 : index
    %5 = vector.load %arg3[%c0_3, %c0_4] : memref<1x256xf32, #tpu.memory_space<vmem>>, vector<1x256xf32>
    %6 = vector.broadcast %5 : vector<1x256xf32> to vector<128x256xf32>
    %7 = arith.addf %4, %6 : vector<128x256xf32>
    %cst = arith.constant 0.000000e+00 : f32
    %8 = vector.broadcast %cst : f32 to vector<128x256xf32>
    %9 = arith.maximumf %7, %8 : vector<128x256xf32>
    %10 = arith.truncf %9 : vector<128x256xf32> to vector<128x256xbf16>
    %c0_5 = arith.constant 0 : index
    %c0_6 = arith.constant 0 : index
    %11 = vector.load %arg4[%c0_5, %c0_6] : memref<256x128xbf16, #tpu.memory_space<vmem>>, vector<256x128xbf16>
    %cst_7 = arith.constant dense<0.000000e+00> : vector<128x128xf32>
    %12 = tpu.matmul %10, %11, %cst_7 {dimension_numbers = #tpu.dot_dimension_numbers<[1], [0], [0], [1], [0, 0, 1, 1], [], []>} : vector<128x256xbf16>, vector<256x128xbf16>, vector<128x128xf32> -> vector<128x128xf32>
    %c0_8 = arith.constant 0 : index
    %c0_9 = arith.constant 0 : index
    %13 = vector.load %arg5[%c0_8, %c0_9] : memref<128x128xf32, #tpu.memory_space<vmem>>, vector<128x128xf32>
    tpu.vector_store %arg5[%c0_8, %c0_9], %12 {strides = array<i32>} : memref<128x128xf32, #tpu.memory_space<vmem>>, vector<128x128xf32>,
    return
  }
  func.func @transform_0(%arg0: i32) -> (i32, i32) {
    %c0_i32 = arith.constant 0 : i32
    %c0_i32_0 = arith.constant 0 : i32
    return %arg0, %c0_i32 : i32, i32
  }
  func.func @transform_1(%arg0: i32) -> (i32, i32) {
    %c0_i32 = arith.constant 0 : i32
    %c0_i32_0 = arith.constant 0 : i32
    %c0_i32_1 = arith.constant 0 : i32
    return %c0_i32, %c0_i32_0 : i32, i32
  }
  func.func @transform_2(%arg0: i32) -> (i32, i32) {
    %c0_i32 = arith.constant 0 : i32
    %c0_i32_0 = arith.constant 0 : i32
    %c0_i32_1 = arith.constant 0 : i32
    return %c0_i32, %c0_i32_0 : i32, i32
  }
  func.func @transform_3(%arg0: i32) -> (i32, i32) {
    %c0_i32 = arith.constant 0 : i32
    %c0_i32_0 = arith.constant 0 : i32
    %c0_i32_1 = arith.constant 0 : i32
    return %c0_i32, %c0_i32_0 : i32, i32
  }
  func.func @transform_4(%arg0: i32) -> (i32, i32) {
    %c0_i32 = arith.constant 0 : i32
    %c0_i32_0 = arith.constant 0 : i32
    return %arg0, %c0_i32 : i32, i32
  }
}

module attributes {stable_mosaic.version = 11 : i64} {
  func.func @_linear1_stats_kernel(%arg0: i32, %arg1: memref<64x256xf32, #tpu.memory_space<vmem>>, %arg2: memref<256x256xbf16, #tpu.memory_space<vmem>>, %arg3: memref<64x256xbf16, #tpu.memory_space<vmem>>, %arg4: memref<1x1x256xf32, #tpu.memory_space<vmem>>, %arg5: memref<1x1x256xf32, #tpu.memory_space<vmem>>) attributes {dimension_semantics = [#tpu.dimension_semantics<parallel>], iteration_bounds = array<i64: 2>, scalar_prefetch = 0 : i64, scratch_operands = 0 : i64, tpu.core_type = #tpu.core_type<tc>, window_params = [{transform_indices = @transform_0, window_bounds = array<i64: 64, 256>}, {pipeline_mode = #tpu.pipeline_mode<synchronous>, transform_indices = @transform_1, window_bounds = array<i64: 256, 256>}, {transform_indices = @transform_2, window_bounds = array<i64: 64, 256>}, {transform_indices = @transform_3, window_bounds = array<i64: 1, 1, 256>}, {transform_indices = @transform_4, window_bounds = array<i64: 1, 1, 256>}]} {
    %c0 = arith.constant 0 : index
    %c0_0 = arith.constant 0 : index
    %0 = vector.load %arg1[%c0, %c0_0] : memref<64x256xf32, #tpu.memory_space<vmem>>, vector<64x256xf32>
    %1 = arith.truncf %0 : vector<64x256xf32> to vector<64x256xbf16>
    %c0_1 = arith.constant 0 : index
    %c0_2 = arith.constant 0 : index
    %2 = vector.load %arg2[%c0_1, %c0_2] : memref<256x256xbf16, #tpu.memory_space<vmem>>, vector<256x256xbf16>
    %cst = arith.constant dense<0.000000e+00> : vector<64x256xf32>
    %3 = tpu.matmul %1, %2, %cst {dimension_numbers = #tpu.dot_dimension_numbers<[1], [0], [0], [1], [0, 0, 1, 1], [], []>} : vector<64x256xbf16>, vector<256x256xbf16>, vector<64x256xf32> -> vector<64x256xf32>
    %cst_3 = arith.constant dense<0.000000e+00> : vector<256xf32>
    %4 = vector.multi_reduction <add>, %3, %cst_3 [0] : vector<64x256xf32> to vector<256xf32>
    %5 = vector.shape_cast %4 : vector<256xf32> to vector<1x256xf32>
    %c0_4 = arith.constant 0 : index
    %c0_5 = arith.constant 0 : index
    %c0_6 = arith.constant 0 : index
    %6 = vector.load %arg4[%c0_4, %c0_5, %c0_6] : memref<1x1x256xf32, #tpu.memory_space<vmem>>, vector<1x1x256xf32>
    %7 = vector.shape_cast %6 : vector<1x1x256xf32> to vector<1x256xf32>
    %8 = vector.shape_cast %5 : vector<1x256xf32> to vector<1x1x256xf32>
    tpu.vector_store %arg4[%c0_4, %c0_5, %c0_6], %8 {strides = array<i32>} : memref<1x1x256xf32, #tpu.memory_space<vmem>>, vector<1x1x256xf32>,
    %9 = arith.mulf %3, %3 : vector<64x256xf32>
    %cst_7 = arith.constant dense<0.000000e+00> : vector<256xf32>
    %10 = vector.multi_reduction <add>, %9, %cst_7 [0] : vector<64x256xf32> to vector<256xf32>
    %11 = vector.shape_cast %10 : vector<256xf32> to vector<1x256xf32>
    %c0_8 = arith.constant 0 : index
    %c0_9 = arith.constant 0 : index
    %c0_10 = arith.constant 0 : index
    %12 = vector.load %arg5[%c0_8, %c0_9, %c0_10] : memref<1x1x256xf32, #tpu.memory_space<vmem>>, vector<1x1x256xf32>
    %13 = vector.shape_cast %12 : vector<1x1x256xf32> to vector<1x256xf32>
    %14 = vector.shape_cast %11 : vector<1x256xf32> to vector<1x1x256xf32>
    tpu.vector_store %arg5[%c0_8, %c0_9, %c0_10], %14 {strides = array<i32>} : memref<1x1x256xf32, #tpu.memory_space<vmem>>, vector<1x1x256xf32>,
    %15 = arith.truncf %3 : vector<64x256xf32> to vector<64x256xbf16>
    %c0_11 = arith.constant 0 : index
    %c0_12 = arith.constant 0 : index
    %16 = vector.load %arg3[%c0_11, %c0_12] : memref<64x256xbf16, #tpu.memory_space<vmem>>, vector<64x256xbf16>
    tpu.vector_store %arg3[%c0_11, %c0_12], %15 {strides = array<i32>} : memref<64x256xbf16, #tpu.memory_space<vmem>>, vector<64x256xbf16>,
    return
  }
  func.func @transform_0(%arg0: i32) -> (i32, i32) {
    %c0_i32 = arith.constant 0 : i32
    %c0_i32_0 = arith.constant 0 : i32
    return %arg0, %c0_i32 : i32, i32
  }
  func.func @transform_1(%arg0: i32) -> (i32, i32) {
    %c0_i32 = arith.constant 0 : i32
    %c0_i32_0 = arith.constant 0 : i32
    %c0_i32_1 = arith.constant 0 : i32
    return %c0_i32, %c0_i32_0 : i32, i32
  }
  func.func @transform_2(%arg0: i32) -> (i32, i32) {
    %c0_i32 = arith.constant 0 : i32
    %c0_i32_0 = arith.constant 0 : i32
    return %arg0, %c0_i32 : i32, i32
  }
  func.func @transform_3(%arg0: i32) -> (i32, i32, i32) {
    %c0_i32 = arith.constant 0 : i32
    %c0_i32_0 = arith.constant 0 : i32
    %c0_i32_1 = arith.constant 0 : i32
    return %arg0, %c0_i32, %c0_i32_0 : i32, i32, i32
  }
  func.func @transform_4(%arg0: i32) -> (i32, i32, i32) {
    %c0_i32 = arith.constant 0 : i32
    %c0_i32_0 = arith.constant 0 : i32
    %c0_i32_1 = arith.constant 0 : i32
    return %arg0, %c0_i32, %c0_i32_0 : i32, i32, i32
  }
}

</mosaic_0001>

<llo_original>
// kernel: projection_head.2
$region0: #{projection_head.2}
  #allocation0 [shape = 'u32[]', space=smem, size = 0x4, offset = 0x4, fixed_abs, tag = 'smem constant byte address 0x4 - core index']
  #allocation1 [shape = 'u32[144,128]{1,0:T(1,128)}', space=vmem, size = 0x12000, scoped, tag = 'internal scratch']
  %s0 = inlined_call_operand.hbm [shape: f32[128,256], index: 0, kind: input, shape index: {}]
  %s1 = inlined_call_operand.hbm [shape: bf16[256,256], index: 1, kind: input, shape index: {}]
  %s2 = inlined_call_operand.vmem [shape: bf16[128,256], index: 2, kind: output, shape index: {0}]
  %s3 = inlined_call_operand.vmem [shape: f32[2,1,256], index: 3, kind: output, shape index: {1}]
  %s4 = inlined_call_operand.vmem [shape: f32[2,1,256], index: 4, kind: output, shape index: {2}]
  %5 = xla_tuple %s2, %s3, %s4
  %s6 = sld [smem:[#allocation0]]
  $region65: #{projection_head.2} parent=0
    _
  %s8 = ssub.s32 1, %s6
  %s9 = scalar_select 0, %s8, %s6
  $region1: #{projection_head.2} parent=0
    #allocation2 [shape = 'u8[131072]{0}', space=vmem, size = 0x20000, scoped, tag = 'input window, operand 0']
    #allocation3 [shape = 's32[2]{0}', space=sflag, size = 0x8, scoped, tag = 'scoped memory for projection_head.2']
    #allocation4 [shape = 'u8[131072]{0}', space=vmem, size = 0x20000, scoped, tag = 'input window, operand 1, single buffered']
    #allocation5 [shape = 's32[1]{0}', space=sflag, size = 0x4, scoped, tag = 'scoped memory for projection_head.2']
    %10 = vsyncpa [#allocation3], 0
    %s11 = scalar_lea.sflag [#allocation3], 1
    %12 = vsyncpa %s11, 0
    %13 = vsyncpa [#allocation5], 0
    loop: start=0, step=1, limit=4
    $region2: #{projection_head.2} parent=1 // loop_pre_header
      _
    $region3: #{projection_head.2} parent=1 // loop_header
      %s15 = sphi 0, %s19
      %p16 = scmp.ge.s32.totalorder %s15, 4
      %s25 = sphi 0, %s27
      %s28 = sphi 0, %s25
      %s29 = sphi 0, %s28
      %s45 = sphi 0, %s29
      %s49 = sphi 0, %s49
      %s51 = sphi 0, %s49
      %s52 = sphi 0, %s51
      %s66 = sphi 0, %s52
      %s72 = sphi 0, %s74
      %s75 = sphi 0, %s72
      %s76 = sphi 0, %s75
      %s92 = sphi 0, %s76
      %s98 = sphi 0, %s100
      %s101 = sphi 0, %s98
      %s102 = sphi 0, %s101
      %s118 = sphi 0, %s102
      %s124 = sphi 0, %s126
      %s127 = sphi 0, %s124
      %s128 = sphi 0, %s127
      %s144 = sphi 0, %s128
    $region4: #{projection_head.2} parent=1 // loop_header_branch
      %18 = sbr.rel (%p16) target = $region8
    $region5: #{projection_head.2} parent=1 // loop_body
      %s20 = ssub.s32 %s15, 1
      %s21 = ssub.s32 %s15, 2
      %s22 = sadd.s32 %s15, 1
      %s23 = ssub.s32 %s15, %s22
      %p24 = scmp.eq.s32.totalorder %s23, 0
      %s26 = sadd.s32 %s25, 1
      %s27 = scalar_select %p24, %s25, %s26
      %p30 = pneg %p24
      %p31 = scmp.eq.s32.totalorder %s15, 1
      %p32 = por %p30, %p31
      %p33 = scmp.ne.s32.totalorder %s25, %s28
      %p34 = scmp.eq.s32.totalorder %s15, 0
      %p35 = por %p33, %p34
      %p36 = scmp.ne.s32.totalorder %s25, %s28
      %p37 = scmp.eq.s32.totalorder %s20, 1
      %p38 = por %p36, %p37
      %p39 = scmp.ne.s32.totalorder %s28, %s29
      %p40 = scmp.eq.s32.totalorder %s20, 0
      %p41 = por %p39, %p40
      %p42 = scmp.ne.s32.totalorder %s28, %s29
      %p43 = scmp.eq.s32.totalorder %s21, 1
      %p44 = por %p42, %p43
      %p46 = scmp.ne.s32.totalorder %s29, %s45
      %p47 = scmp.eq.s32.totalorder %s21, 0
      %p48 = por %p46, %p47
      %s50 = sadd.s32 %s49, 1
      %p53 = scmp.eq.s32.totalorder %s15, 1
      %p54 = scmp.ne.s32.totalorder %s49, %s51
      %p55 = scmp.eq.s32.totalorder %s15, 0
      %p56 = por %p54, %p55
      %p57 = scmp.ne.s32.totalorder %s49, %s51
      %p58 = scmp.eq.s32.totalorder %s20, 1
      %p59 = por %p57, %p58
      %p60 = scmp.ne.s32.totalorder %s51, %s52
      %p61 = scmp.eq.s32.totalorder %s20, 0
      %p62 = por %p60, %p61
      %p63 = scmp.ne.s32.totalorder %s51, %s52
      %p64 = scmp.eq.s32.totalorder %s21, 1
      %p65 = por %p63, %p64
      %p67 = scmp.ne.s32.totalorder %s52, %s66
      %p68 = scmp.eq.s32.totalorder %s21, 0
      %p69 = por %p67, %p68
      %s70 = ssub.s32 %s15, %s22
      %p71 = scmp.eq.s32.totalorder %s70, 0
      %s73 = sadd.s32 %s72, 1
      %s74 = scalar_select %p71, %s72, %s73
      %p77 = pneg %p71
      %p78 = scmp.eq.s32.totalorder %s15, 1
      %p79 = por %p77, %p78
      %p80 = scmp.ne.s32.totalorder %s72, %s75
      %p81 = scmp.eq.s32.totalorder %s15, 0
      %p82 = por %p80, %p81
      %p83 = scmp.ne.s32.totalorder %s72, %s75
      %p84 = scmp.eq.s32.totalorder %s20, 1
      %p85 = por %p83, %p84
      %p86 = scmp.ne.s32.totalorder %s75, %s76
      %p87 = scmp.eq.s32.totalorder %s20, 0
      %p88 = por %p86, %p87
      %p89 = scmp.ne.s32.totalorder %s75, %s76
      %p90 = scmp.eq.s32.totalorder %s21, 1
      %p91 = por %p89, %p90
      %p93 = scmp.ne.s32.totalorder %s76, %s92
      %p94 = scmp.eq.s32.totalorder %s21, 0
      %p95 = por %p93, %p94
      %s96 = ssub.s32 %s15, %s22
      %p97 = scmp.eq.s32.totalorder %s96, 0
      %s99 = sadd.s32 %s98, 1
      %s100 = scalar_select %p97, %s98, %s99
      %p103 = pneg %p97
      %p104 = scmp.eq.s32.totalorder %s15, 1
      %p105 = por %p103, %p104
      %p106 = scmp.ne.s32.totalorder %s98, %s101
      %p107 = scmp.eq.s32.totalorder %s15, 0
      %p108 = por %p106, %p107
      %p109 = scmp.ne.s32.totalorder %s98, %s101
      %p110 = scmp.eq.s32.totalorder %s20, 1
      %p111 = por %p109, %p110
      %p112 = scmp.ne.s32.totalorder %s101, %s102
      %p113 = scmp.eq.s32.totalorder %s20, 0
      %p114 = por %p112, %p113
      %p115 = scmp.ne.s32.totalorder %s101, %s102
      %p116 = scmp.eq.s32.totalorder %s21, 1
      %p117 = por %p115, %p116
      %p119 = scmp.ne.s32.totalorder %s102, %s118
      %p120 = scmp.eq.s32.totalorder %s21, 0
      %p121 = por %p119, %p120
      %s122 = ssub.s32 %s15, %s22
      %p123 = scmp.eq.s32.totalorder %s122, 0
      %s125 = sadd.s32 %s124, 1
      %s126 = scalar_select %p123, %s124, %s125
      %p129 = pneg %p123
      %p130 = scmp.eq.s32.totalorder %s15, 1
      %p131 = por %p129, %p130
      %p132 = scmp.ne.s32.totalorder %s124, %s127
      %p133 = scmp.eq.s32.totalorder %s15, 0
      %p134 = por %p132, %p133
      %p135 = scmp.ne.s32.totalorder %s124, %s127
      %p136 = scmp.eq.s32.totalorder %s20, 1
      %p137 = por %p135, %p136
      %p138 = scmp.ne.s32.totalorder %s127, %s128
      %p139 = scmp.eq.s32.totalorder %s20, 0
      %p140 = por %p138, %p139
      %p141 = scmp.ne.s32.totalorder %s127, %s128
      %p142 = scmp.eq.s32.totalorder %s21, 1
      %p143 = por %p141, %p142
      %p145 = scmp.ne.s32.totalorder %s128, %s144
      %p146 = scmp.eq.s32.totalorder %s21, 0
      %p147 = por %p145, %p146
      %p148 = scmp.le.s32.totalorder 1, %s15
      %p149 = scmp.lt.s32.totalorder %s15, 3
      %p150 = pnand %p148, %p149
      %p151 = pneg %p150
      // Predicated region
      $region9: #{projection_head.2} parent=5 // pred_check
        _
      $region10: #{projection_head.2} parent=5 // pred_check_branch
        %153 = sbr.rel (%p150) target = $region12
      $region11: #{projection_head.2} parent=5 // pred_region
        %s154 = ssub.s32 %s15, 1
        // Predicated region
        $region13: #{projection_head.2} parent=11 // pred_check
          %p155 = pneg %p62
        $region14: #{projection_head.2} parent=11 // pred_check_branch
          %157 = sbr.rel (%p155) target = $region16
        $region15: #{projection_head.2} parent=11 // pred_region
          %s159 = ssub.s32 4096, 4096
          %160 = vsyncadd [#allocation5], %s159
          %s161 = sshll.u32 [#allocation4], 4
          %s162 = int_to_ptr.vmem [resolvable:$true] %s161
          %167 = dma.hbm_to_vmem [thread:$0]  %s1, 4096, %s162, [#allocation5], 128, 128, 8
        $region16: #{projection_head.2} parent=11 // pred_fallthru
          _
      $region12: #{projection_head.2} parent=5 // pred_fallthru
        _
      %p168 = scmp.lt.s32.totalorder %s15, 2
      // Predicated region
      $region17: #{projection_head.2} parent=5 // pred_check
        %p169 = pneg %p168
      $region18: #{projection_head.2} parent=5 // pred_check_branch
        %171 = sbr.rel (%p169) target = $region20
      $region19: #{projection_head.2} parent=5 // pred_region
        // Predicated region
        $region21: #{projection_head.2} parent=19 // pred_check
          %p172 = pneg %p35
        $region22: #{projection_head.2} parent=19 // pred_check_branch
          %174 = sbr.rel (%p172) target = $region24
        $region23: #{projection_head.2} parent=19 // pred_region
          %s175 = sand.u32 %s25, 1
          %s176 = scalar_lea.sflag [#allocation3], %s175
          %s177 = sand.u32 %s25, 1
          %s178 = smul.addr %s177, 128
          %s179 = scalar_lea.vmem [#allocation2], %s178
          %s180 = smul.u32 8, %s15
          %s182 = ssub.s32 2048, 2048
          %183 = vsyncadd %s176, %s182
          %s184 = smul.addr %s180, 2
          %s185 = smul.addr %s184, 128
          %s186 = scalar_lea.hbm %s0, %s185
          %s187 = sshll.u32 %s179, 4
          %s188 = int_to_ptr.vmem [resolvable:$true] %s187
          %193 = dma.hbm_to_vmem [thread:$0]  %s186, 2048, %s188, %s176, 256, 256, 16
        $region24: #{projection_head.2} parent=19 // pred_fallthru
          _
      $region20: #{projection_head.2} parent=5 // pred_fallthru
        _
      %p194 = scmp.le.s32.totalorder 1, %s15
      %p195 = scmp.lt.s32.totalorder %s15, 3
      %p196 = pnand %p194, %p195
      %p197 = pneg %p196
      // Predicated region
      $region25: #{projection_head.2} parent=5 // pred_check
        _
      $region26: #{projection_head.2} parent=5 // pred_check_branch
        %199 = sbr.rel (%p196) target = $region28
      $region27: #{projection_head.2} parent=5 // pred_region
        %s200 = ssub.s32 %s15, 1
        %s201 = sand.u32 %s28, 1
        %s202 = scalar_lea.sflag [#allocation3], %s201
        %s203 = sand.u32 %s28, 1
        %s204 = smul.addr %s203, 128
        %s205 = scalar_lea.vmem [#allocation2], %s204
        // Predicated region
        $region29: #{projection_head.2} parent=27 // pred_check
          %p206 = pneg %p41
        $region30: #{projection_head.2} parent=27 // pred_check_branch
          %208 = sbr.rel (%p206) target = $region32
        $region31: #{projection_head.2} parent=27 // pred_region
          %209 = dma.done %s202, 2048
        $region32: #{projection_head.2} parent=27 // pred_fallthru
          _
        // Predicated region
        $region33: #{projection_head.2} parent=27 // pred_check
          %p210 = pneg %p62
        $region34: #{projection_head.2} parent=27 // pred_check_branch
          %212 = sbr.rel (%p210) target = $region36
        $region35: #{projection_head.2} parent=27 // pred_region
          %213 = dma.done [#allocation5], 4096
        $region36: #{projection_head.2} parent=27 // pred_fallthru
          _
        %s214 = sand.u32 %s28, 1
        %s215 = scalar_lea.sflag [#allocation3], %s214
        %s216 = sand.u32 %s28, 1
        %s217 = smul.addr %s216, 128
        %s218 = scalar_lea.vmem [#allocation2], %s217
        %p219 = pneg %p41
        %p220 = pneg %p38
        %p221 = pneg %p62
        %p222 = pneg %p59
        %p223 = pneg %p88
        %p224 = pneg %p85
        %s225 = smul.u32 8, %s20
        %p226 = scmp.lt.s32.totalorder %s225, 15
        %s227 = scalar_select %p226, %s225, 15
        %s228 = smul.addr %s227, 2
        %s229 = smul.addr %s228, 4
        %s230 = scalar_lea.vmem %s2, %s229
        %p231 = pneg %p114
        %p232 = pneg %p111
        %p233 = scmp.lt.s32.totalorder %s20, 1
        %s234 = scalar_select %p233, %s20, 1
        %s235 = smul.addr %s234, 2
        %s236 = scalar_lea.vmem %s3, %s235
        %p237 = pneg %p140
        %p238 = pneg %p137
        %p239 = scmp.lt.s32.totalorder %s20, 1
        %s240 = scalar_select %p239, %s20, 1
        %s241 = smul.addr %s240, 2
        %s242 = scalar_lea.vmem %s4, %s241
        %s243 = smul.u32 8, %s20
        %s244 = smul.u32 8, %s20
        %p245 = scmp.lt.s32.totalorder %s244, 15
        %s246 = scalar_select %p245, %s244, 15
        %s247 = smul.addr %s246, 2
        %s248 = smul.addr %s247, 4
        %s249 = scalar_lea.vmem %s2, %s248
        %s250 = smul.u32 8, %s20
        %p251 = scmp.lt.s32.totalorder %s20, 1
        %s252 = scalar_select %p251, %s20, 1
        %s253 = smul.addr %s252, 2
        %s254 = scalar_lea.vmem %s3, %s253
        %p255 = scmp.lt.s32.totalorder %s20, 1
        %s256 = scalar_select %p255, %s20, 1
        %s257 = smul.addr %s256, 2
        %s258 = scalar_lea.vmem %s4, %s257
        %v259 = vld [vmem:[%s205] sm:$0xff]
        %v260 = vld [vmem:[%s205 + $0x8] sm:$0xff]
        %v261 = vld [vmem:[%s205 + $0x10] sm:$0xff]
        %v262 = vld [vmem:[%s205 + $0x18] sm:$0xff]
        %v263 = vld [vmem:[%s205 + $0x20] sm:$0xff]
        %v264 = vld [vmem:[%s205 + $0x28] sm:$0xff]
        %v265 = vld [vmem:[%s205 + $0x30] sm:$0xff]
        %v266 = vld [vmem:[%s205 + $0x38] sm:$0xff]
        %v267 = vld [vmem:[%s205 + $0x40] sm:$0xff]
        %v268 = vld [vmem:[%s205 + $0x48] sm:$0xff]
        %v269 = vld [vmem:[%s205 + $0x50] sm:$0xff]
        %v270 = vld [vmem:[%s205 + $0x58] sm:$0xff]
        %v271 = vld [vmem:[%s205 + $0x60] sm:$0xff]
        %v272 = vld [vmem:[%s205 + $0x68] sm:$0xff]
        %v273 = vld [vmem:[%s205 + $0x70] sm:$0xff]
        %v274 = vld [vmem:[%s205 + $0x78] sm:$0xff]
        %v275 = vpack.c.bf16 %v261, %v259
        %v276 = vpack.c.bf16 %v262, %v260
        %v277 = vpack.c.bf16 %v265, %v263
        %v278 = vpack.c.bf16 %v266, %v264
        %v279 = vpack.c.bf16 %v269, %v267
        %v280 = vpack.c.bf16 %v270, %v268
        %v281 = vpack.c.bf16 %v273, %v271
        %v282 = vpack.c.bf16 %v274, %v272
        %v283 = vld [vmem:[#allocation4] sm:$0xff]
        %v284 = vld [vmem:[#allocation4 + $0x8] sm:$0xff]
        %v285 = vld [vmem:[#allocation4 + $0x10] sm:$0xff]
        %v286 = vld [vmem:[#allocation4 + $0x18] sm:$0xff]
        %v287 = vld [vmem:[#allocation4 + $0x20] sm:$0xff]
        %v288 = vld [vmem:[#allocation4 + $0x28] sm:$0xff]
        %v289 = vld [vmem:[#allocation4 + $0x30] sm:$0xff]
        %v290 = vld [vmem:[#allocation4 + $0x38] sm:$0xff]
        %v291 = vld [vmem:[#allocation4 + $0x40] sm:$0xff]
        %v292 = vld [vmem:[#allocation4 + $0x48] sm:$0xff]
        %v293 = vld [vmem:[#allocation4 + $0x50] sm:$0xff]
        %v294 = vld [vmem:[#allocation4 + $0x58] sm:$0xff]
        %v295 = vld [vmem:[#allocation4 + $0x60] sm:$0xff]
        %v296 = vld [vmem:[#allocation4 + $0x68] sm:$0xff]
        %v297 = vld [vmem:[#allocation4 + $0x70] sm:$0xff]
        %v298 = vld [vmem:[#allocation4 + $0x78] sm:$0xff]
        %v299 = vld [vmem:[#allocation4 + $0x80] sm:$0xff]
        %v300 = vld [vmem:[#allocation4 + $0x88] sm:$0xff]
        %v301 = vld [vmem:[#allocation4 + $0x90] sm:$0xff]
        %v302 = vld [vmem:[#allocation4 + $0x98] sm:$0xff]
        %v303 = vld [vmem:[#allocation4 + $0xa0] sm:$0xff]
        %v304 = vld [vmem:[#allocation4 + $0xa8] sm:$0xff]
        %v305 = vld [vmem:[#allocation4 + $0xb0] sm:$0xff]
        %v306 = vld [vmem:[#allocation4 + $0xb8] sm:$0xff]
        %v307 = vld [vmem:[#allocation4 + $0xc0] sm:$0xff]
        %v308 = vld [vmem:[#allocation4 + $0xc8] sm:$0xff]
        %v309 = vld [vmem:[#allocation4 + $0xd0] sm:$0xff]
        %v310 = vld [vmem:[#allocation4 + $0xd8] sm:$0xff]
        %v311 = vld [vmem:[#allocation4 + $0xe0] sm:$0xff]
        %v312 = vld [vmem:[#allocation4 + $0xe8] sm:$0xff]
        %v313 = vld [vmem:[#allocation4 + $0xf0] sm:$0xff]
        %v314 = vld [vmem:[#allocation4 + $0xf8] sm:$0xff]
        %v347 = vunpack.c.l.b16 %v283
        %v348 = vunpack.c.h.b16 %v283
        %v349 = vunpack.c.l.b16 %v284
        %v350 = vunpack.c.h.b16 %v284
        %v351 = vunpack.c.l.b16 %v285
        %v352 = vunpack.c.h.b16 %v285
        %v353 = vunpack.c.l.b16 %v286
        %v354 = vunpack.c.h.b16 %v286
        %v355 = vunpack.c.l.b16 %v287
        %v356 = vunpack.c.h.b16 %v287
        %v357 = vunpack.c.l.b16 %v288
        %v358 = vunpack.c.h.b16 %v288
        %v359 = vunpack.c.l.b16 %v289
        %v360 = vunpack.c.h.b16 %v289
        %v361 = vunpack.c.l.b16 %v290
        %v362 = vunpack.c.h.b16 %v290
        %v363 = vunpack.c.l.b16 %v291
        %v364 = vunpack.c.h.b16 %v291
        %v365 = vunpack.c.l.b16 %v292
        %v366 = vunpack.c.h.b16 %v292
        %v367 = vunpack.c.l.b16 %v293
        %v368 = vunpack.c.h.b16 %v293
        %v369 = vunpack.c.l.b16 %v294
        %v370 = vunpack.c.h.b16 %v294
        %v371 = vunpack.c.l.b16 %v295
        %v372 = vunpack.c.h.b16 %v295
        %v373 = vunpack.c.l.b16 %v296
        %v374 = vunpack.c.h.b16 %v296
        %v375 = vunpack.c.l.b16 %v297
        %v376 = vunpack.c.h.b16 %v297
        %v377 = vunpack.c.l.b16 %v298
        %v378 = vunpack.c.h.b16 %v298
        %v379 = vunpack.c.l.b16 %v299
        %v380 = vunpack.c.h.b16 %v299
        %v381 = vunpack.c.l.b16 %v300
        %v382 = vunpack.c.h.b16 %v300
        %v383 = vunpack.c.l.b16 %v301
        %v384 = vunpack.c.h.b16 %v301
        %v385 = vunpack.c.l.b16 %v302
        %v386 = vunpack.c.h.b16 %v302
        %v387 = vunpack.c.l.b16 %v303
        %v388 = vunpack.c.h.b16 %v303
        %v389 = vunpack.c.l.b16 %v304
        %v390 = vunpack.c.h.b16 %v304
        %v391 = vunpack.c.l.b16 %v305
        %v392 = vunpack.c.h.b16 %v305
        %v393 = vunpack.c.l.b16 %v306
        %v394 = vunpack.c.h.b16 %v306
        %v395 = vunpack.c.l.b16 %v307
        %v396 = vunpack.c.h.b16 %v307
        %v397 = vunpack.c.l.b16 %v308
        %v398 = vunpack.c.h.b16 %v308
        %v399 = vunpack.c.l.b16 %v309
        %v400 = vunpack.c.h.b16 %v309
        %v401 = vunpack.c.l.b16 %v310
        %v402 = vunpack.c.h.b16 %v310
        %v403 = vunpack.c.l.b16 %v311
        %v404 = vunpack.c.h.b16 %v311
        %v405 = vunpack.c.l.b16 %v312
        %v406 = vunpack.c.h.b16 %v312
        %v407 = vunpack.c.l.b16 %v313
        %v408 = vunpack.c.h.b16 %v313
        %v409 = vunpack.c.l.b16 %v314
        %v410 = vunpack.c.h.b16 %v314
        %v411 = vpack.c.b16 %v349, %v347
        %v412 = vpack.c.b16 %v350, %v348
        %v413 = vpack.c.b16 %v353, %v351
        %v414 = vpack.c.b16 %v354, %v352
        %v415 = vpack.c.b16 %v357, %v355
        %v416 = vpack.c.b16 %v358, %v356
        %v417 = vpack.c.b16 %v361, %v359
        %v418 = vpack.c.b16 %v362, %v360
        %v419 = vpack.c.b16 %v365, %v363
        %v420 = vpack.c.b16 %v366, %v364
        %v421 = vpack.c.b16 %v369, %v367
        %v422 = vpack.c.b16 %v370, %v368
        %v423 = vpack.c.b16 %v373, %v371
        %v424 = vpack.c.b16 %v374, %v372
        %v425 = vpack.c.b16 %v377, %v375
        %v426 = vpack.c.b16 %v378, %v376
        %v427 = vpack.c.b16 %v381, %v379
        %v428 = vpack.c.b16 %v382, %v380
        %v429 = vpack.c.b16 %v385, %v383
        %v430 = vpack.c.b16 %v386, %v384
        %v431 = vpack.c.b16 %v389, %v387
        %v432 = vpack.c.b16 %v390, %v388
        %v433 = vpack.c.b16 %v393, %v391
        %v434 = vpack.c.b16 %v394, %v392
        %v435 = vpack.c.b16 %v397, %v395
        %v436 = vpack.c.b16 %v398, %v396
        %v437 = vpack.c.b16 %v401, %v399
        %v438 = vpack.c.b16 %v402, %v400
        %v439 = vpack.c.b16 %v405, %v403
        %v440 = vpack.c.b16 %v406, %v404
        %v441 = vpack.c.b16 %v409, %v407
        %v442 = vpack.c.b16 %v410, %v408
        %475 = vmatprep.subr.bf16.mxu0 %v426
        %476 = vmatpush1.bf16.msra.mxu0 %v425
        %477 = vmatprep.subr.bf16.mxu0 %v424
        %478 = vmatpush1.bf16.msra.mxu0 %v423
        %479 = vmatprep.subr.bf16.mxu0 %v422
        %480 = vmatpush1.bf16.msra.mxu0 %v421
        %481 = vmatprep.subr.bf16.mxu0 %v420
        %482 = vmatpush1.bf16.msra.mxu0 %v419
        %483 = vmatprep.subr.bf16.mxu0 %v418
        %484 = vmatpush1.bf16.msra.mxu0 %v417
        %485 = vmatprep.subr.bf16.mxu0 %v416
        %486 = vmatpush1.bf16.msra.mxu0 %v415
        %487 = vmatprep.subr.bf16.mxu0 %v414
        %488 = vmatpush1.bf16.msra.mxu0 %v413
        %489 = vmatprep.subr.bf16.mxu0 %v412
        %490 = vmatpush1.bf16.msra.mxu0 %v411
        %491 = vmatprep.subr.bf16.mxu0 %v442
        %492 = vmatpush2.bf16.msra.mxu0 %v441
        %493 = vmatprep.subr.bf16.mxu0 %v440
        %494 = vmatpush2.bf16.msra.mxu0 %v439
        %495 = vmatprep.subr.bf16.mxu0 %v438
        %496 = vmatpush2.bf16.msra.mxu0 %v437
        %497 = vmatprep.subr.bf16.mxu0 %v436
        %498 = vmatpush2.bf16.msra.mxu0 %v435
        %499 = vmatprep.subr.bf16.mxu0 %v434
        %500 = vmatpush2.bf16.msra.mxu0 %v433
        %501 = vmatprep.subr.bf16.mxu0 %v432
        %502 = vmatpush2.bf16.msra.mxu0 %v431
        %503 = vmatprep.subr.bf16.mxu0 %v430
        %504 = vmatpush2.bf16.msra.mxu0 %v429
        %505 = vmatprep.subr.bf16.mxu0 %v428
        %506 = vmatpush2.bf16.msra.mxu0 %v427
        %507 = vmatprep.mubr.bf16.mxu0 %v276
        %508 = vmatmul.mubr.bf16.gmra.mxu0 %v275
        %v509 = vpop.f32.mrf.mxu0
        %v510 = vadd.f32 0.0, %v509
        %v511 = vpop.f32.mrf.mxu0
        %v512 = vadd.f32 0.0, %v511
        %v513 = vpop.f32.mrf.mxu0
        %v514 = vadd.f32 0.0, %v513
        %v515 = vpop.f32.mrf.mxu0
        %v516 = vadd.f32 0.0, %v515
        %517 = vmatprep.mubr.bf16.mxu0 %v278
        %518 = vmatmul.mubr.bf16.gmra.mxu0 %v277
        %v519 = vpop.f32.mrf.mxu0
        %v520 = vadd.f32 0.0, %v519
        %v521 = vpop.f32.mrf.mxu0
        %v522 = vadd.f32 0.0, %v521
        %v523 = vpop.f32.mrf.mxu0
        %v524 = vadd.f32 0.0, %v523
        %v525 = vpop.f32.mrf.mxu0
        %v526 = vadd.f32 0.0, %v525
        %527 = vmatprep.mubr.bf16.mxu0 %v280
        %528 = vmatmul.mubr.bf16.gmra.mxu0 %v279
        %v529 = vpop.f32.mrf.mxu0
        %v530 = vadd.f32 0.0, %v529
        %v531 = vpop.f32.mrf.mxu0
        %v532 = vadd.f32 0.0, %v531
        %v533 = vpop.f32.mrf.mxu0
        %v534 = vadd.f32 0.0, %v533
        %v535 = vpop.f32.mrf.mxu0
        %v536 = vadd.f32 0.0, %v535
        %537 = vmatprep.mubr.bf16.mxu0 %v282
        %538 = vmatmul.mubr.bf16.gmra.mxu0 %v281
        %v539 = vpop.f32.mrf.mxu0
        %v540 = vadd.f32 0.0, %v539
        %v541 = vpop.f32.mrf.mxu0
        %v542 = vadd.f32 0.0, %v541
        %v543 = vpop.f32.mrf.mxu0
        %v544 = vadd.f32 0.0, %v543
        %v545 = vpop.f32.mrf.mxu0
        %v546 = vadd.f32 0.0, %v545
        %547 = vdwg.mxu0
        %v548 = vadd.f32 %v510, %v514
        %v549 = vadd.f32 %v548, %v520
        %v550 = vadd.f32 %v549, %v524
        %v551 = vadd.f32 %v550, %v530
        %v552 = vadd.f32 %v551, %v534
        %v553 = vadd.f32 %v552, %v540
        %v554 = vadd.f32 %v553, %v544
        %v555 = vrot.slane %v554, 4
        %v556 = vadd.f32 %v554, %v555
        %v557 = vrot.slane %v556, 2
        %v558 = vadd.f32 %v556, %v557
        %v559 = vrot.slane %v558, 1
        %v560 = vadd.f32 %v558, %v559
        %v561 = vadd.f32 %v512, %v516
        %v562 = vadd.f32 %v561, %v522
        %v563 = vadd.f32 %v562, %v526
        %v564 = vadd.f32 %v563, %v532
        %v565 = vadd.f32 %v564, %v536
        %v566 = vadd.f32 %v565, %v542
        %v567 = vadd.f32 %v566, %v546
        %v568 = vrot.slane %v567, 4
        %v569 = vadd.f32 %v567, %v568
        %v570 = vrot.slane %v569, 2
        %v571 = vadd.f32 %v569, %v570
        %v572 = vrot.slane %v571, 1
        %v573 = vadd.f32 %v571, %v572
        %v576 = vcombine.low %v560, %v573
        %v578 = vunpack.c.l.s4 1966171168
        %v579 = vunpack.c.0.s8 %v578
        %v580 = vlaneseq
        %v581 = vshrl.u32 %v580, 7
        %v582 = vsub.s32 %v579, %v581
        %v583 = vrot.slane %v576, %v582
        %v585 = vunpack.c.l.s4 1966171168
        %v586 = vunpack.c.0.s8 %v585
        %v587 = vlaneseq
        %v588 = vshrl.u32 %v587, 7
        %v589 = vsub.s32 %v586, %v588
        %v590 = vrot.slane %v583, %v589
        %v592 = vlaneseq
        %vm593 = vcmp.ge.s32.totalorder %v592, 0
        %vm594 = vcmp.lt.s32.totalorder %v592, 256
        %vm595 = vmand %vm593, %vm594
        %596 = vst.msk [vmem:[%s254] sm:$0x3] %vm595, %v590
        %v597 = vmul.f32 %v510, %v510
        %v598 = vmul.f32 %v512, %v512
        %v599 = vmul.f32 %v514, %v514
        %v600 = vmul.f32 %v516, %v516
        %v601 = vmul.f32 %v520, %v520
        %v602 = vmul.f32 %v522, %v522
        %v603 = vmul.f32 %v524, %v524
        %v604 = vmul.f32 %v526, %v526
        %v605 = vmul.f32 %v530, %v530
        %v606 = vmul.f32 %v532, %v532
        %v607 = vmul.f32 %v534, %v534
        %v608 = vmul.f32 %v536, %v536
        %v609 = vmul.f32 %v540, %v540
        %v610 = vmul.f32 %v542, %v542
        %v611 = vmul.f32 %v544, %v544
        %v612 = vmul.f32 %v546, %v546
        %v613 = vadd.f32 %v597, %v599
        %v614 = vadd.f32 %v613, %v601
        %v615 = vadd.f32 %v614, %v603
        %v616 = vadd.f32 %v615, %v605
        %v617 = vadd.f32 %v616, %v607
        %v618 = vadd.f32 %v617, %v609
        %v619 = vadd.f32 %v618, %v611
        %v620 = vrot.slane %v619, 4
        %v621 = vadd.f32 %v619, %v620
        %v622 = vrot.slane %v621, 2
        %v623 = vadd.f32 %v621, %v622
        %v624 = vrot.slane %v623, 1
        %v625 = vadd.f32 %v623, %v624
        %v626 = vadd.f32 %v598, %v600
        %v627 = vadd.f32 %v626, %v602
        %v628 = vadd.f32 %v627, %v604
        %v629 = vadd.f32 %v628, %v606
        %v630 = vadd.f32 %v629, %v608
        %v631 = vadd.f32 %v630, %v610
        %v632 = vadd.f32 %v631, %v612
        %v633 = vrot.slane %v632, 4
        %v634 = vadd.f32 %v632, %v633
        %v635 = vrot.slane %v634, 2
        %v636 = vadd.f32 %v634, %v635
        %v637 = vrot.slane %v636, 1
        %v638 = vadd.f32 %v636, %v637
        %v641 = vcombine.low %v625, %v638
        %v643 = vunpack.c.l.s4 1966171168
        %v644 = vunpack.c.0.s8 %v643
        %v645 = vlaneseq
        %v646 = vshrl.u32 %v645, 7
        %v647 = vsub.s32 %v644, %v646
        %v648 = vrot.slane %v641, %v647
        %v650 = vunpack.c.l.s4 1966171168
        %v651 = vunpack.c.0.s8 %v650
        %v652 = vlaneseq
        %v653 = vshrl.u32 %v652, 7
        %v654 = vsub.s32 %v651, %v653
        %v655 = vrot.slane %v648, %v654
        %657 = vst.msk [vmem:[%s258] sm:$0x3] %vm595, %v655
        %v658 = vpack.c.bf16 %v514, %v510
        %v659 = vpack.c.bf16 %v516, %v512
        %v660 = vpack.c.bf16 %v524, %v520
        %v661 = vpack.c.bf16 %v526, %v522
        %v662 = vpack.c.bf16 %v534, %v530
        %v663 = vpack.c.bf16 %v536, %v532
        %v664 = vpack.c.bf16 %v544, %v540
        %v665 = vpack.c.bf16 %v546, %v542
        %v674 = vunpack.c.l.b16 %v658
        %v675 = vunpack.c.l.b16 %v659
        %v676 = vunpack.c.h.b16 %v658
        %v677 = vunpack.c.h.b16 %v659
        %v678 = vunpack.c.l.b16 %v660
        %v679 = vunpack.c.l.b16 %v661
        %v680 = vunpack.c.h.b16 %v660
        %v681 = vunpack.c.h.b16 %v661
        %v682 = vunpack.c.l.b16 %v662
        %v683 = vunpack.c.l.b16 %v663
        %v684 = vunpack.c.h.b16 %v662
        %v685 = vunpack.c.h.b16 %v663
        %v686 = vunpack.c.l.b16 %v664
        %v687 = vunpack.c.l.b16 %v665
        %v688 = vunpack.c.h.b16 %v664
        %v689 = vunpack.c.h.b16 %v665
        %v690 = vpack.c.b16 %v675, %v674
        %v691 = vpack.c.b16 %v677, %v676
        %v692 = vpack.c.b16 %v679, %v678
        %v693 = vpack.c.b16 %v681, %v680
        %v694 = vpack.c.b16 %v683, %v682
        %v695 = vpack.c.b16 %v685, %v684
        %v696 = vpack.c.b16 %v687, %v686
        %v697 = vpack.c.b16 %v689, %v688
        %706 = vst [vmem:[%s249] sm:$0xff] %v690
        %707 = vst [vmem:[%s249 + $0x8] sm:$0xff] %v691
        %708 = vst [vmem:[%s249 + $0x10] sm:$0xff] %v692
        %709 = vst [vmem:[%s249 + $0x18] sm:$0xff] %v693
        %710 = vst [vmem:[%s249 + $0x20] sm:$0xff] %v694
        %711 = vst [vmem:[%s249 + $0x28] sm:$0xff] %v695
        %712 = vst [vmem:[%s249 + $0x30] sm:$0xff] %v696
        %713 = vst [vmem:[%s249 + $0x38] sm:$0xff] %v697
        %s714 = smul.u32 8, %s20
        %p715 = scmp.lt.s32.totalorder %s714, 15
        %s716 = scalar_select %p715, %s714, 15
        %s717 = smul.addr %s716, 2
        %s718 = smul.addr %s717, 4
        %s719 = scalar_lea.vmem %s2, %s718
        %p720 = scmp.lt.s32.totalorder %s20, 1
        %s721 = scalar_select %p720, %s20, 1
        %s722 = smul.addr %s721, 2
        %s723 = scalar_lea.vmem %s3, %s722
        %p724 = scmp.lt.s32.totalorder %s20, 1
        %s725 = scalar_select %p724, %s20, 1
        %s726 = smul.addr %s725, 2
        %s727 = scalar_lea.vmem %s4, %s726
        // Predicated region
        $region37: #{projection_head.2} parent=27 // pred_check
          %p728 = pneg %p85
        $region38: #{projection_head.2} parent=27 // pred_check_branch
          %730 = sbr.rel (%p728) target = $region40
        $region39: #{projection_head.2} parent=27 // pred_region
          %s731 = smul.u32 8, %s20
        $region40: #{projection_head.2} parent=27 // pred_fallthru
          _
        // Predicated region
        $region41: #{projection_head.2} parent=27 // pred_check
          %p732 = pneg %p111
        $region42: #{projection_head.2} parent=27 // pred_check_branch
          %734 = sbr.rel (%p732) target = $region44
        $region43: #{projection_head.2} parent=27 // pred_region
          _
        $region44: #{projection_head.2} parent=27 // pred_fallthru
          _
        // Predicated region
        $region45: #{projection_head.2} parent=27 // pred_check
          %p735 = pneg %p137
        $region46: #{projection_head.2} parent=27 // pred_check_branch
          %737 = sbr.rel (%p735) target = $region48
        $region47: #{projection_head.2} parent=27 // pred_region
          _
        $region48: #{projection_head.2} parent=27 // pred_fallthru
          _
      $region28: #{projection_head.2} parent=5 // pred_fallthru
        _
      %p738 = scmp.le.s32.totalorder 2, %s15
      // Predicated region
      $region49: #{projection_head.2} parent=5 // pred_check
        %p739 = pneg %p738
      $region50: #{projection_head.2} parent=5 // pred_check_branch
        %741 = sbr.rel (%p739) target = $region52
      $region51: #{projection_head.2} parent=5 // pred_region
        %s742 = ssub.s32 %s15, 2
        // Predicated region
        $region53: #{projection_head.2} parent=51 // pred_check
          %p743 = pneg %p91
        $region54: #{projection_head.2} parent=51 // pred_check_branch
          %745 = sbr.rel (%p743) target = $region56
        $region55: #{projection_head.2} parent=51 // pred_region
          %s746 = smul.u32 8, %s21
          %p747 = scmp.lt.s32.totalorder %s746, 15
          %s748 = scalar_select %p747, %s746, 15
          %s749 = smul.addr %s748, 2
          %s750 = smul.addr %s749, 4
          %s751 = scalar_lea.vmem %s2, %s750
        $region56: #{projection_head.2} parent=51 // pred_fallthru
          _
        // Predicated region
        $region57: #{projection_head.2} parent=51 // pred_check
          %p752 = pneg %p117
        $region58: #{projection_head.2} parent=51 // pred_check_branch
          %754 = sbr.rel (%p752) target = $region60
        $region59: #{projection_head.2} parent=51 // pred_region
          %p755 = scmp.lt.s32.totalorder %s21, 1
          %s756 = scalar_select %p755, %s21, 1
          %s757 = smul.addr %s756, 2
          %s758 = scalar_lea.vmem %s3, %s757
        $region60: #{projection_head.2} parent=51 // pred_fallthru
          _
        // Predicated region
        $region61: #{projection_head.2} parent=51 // pred_check
          %p759 = pneg %p143
        $region62: #{projection_head.2} parent=51 // pred_check_branch
          %761 = sbr.rel (%p759) target = $region64
        $region63: #{projection_head.2} parent=51 // pred_region
          %p762 = scmp.lt.s32.totalorder %s21, 1
          %s763 = scalar_select %p762, %s21, 1
          %s764 = smul.addr %s763, 2
          %s765 = scalar_lea.vmem %s4, %s764
        $region64: #{projection_head.2} parent=51 // pred_fallthru
          _
      $region52: #{projection_head.2} parent=5 // pred_fallthru
        _
    $region6: #{projection_head.2} parent=1 // loop_footer
      %s19 = sadd.s32 1, %s15
    $region7: #{projection_head.2} parent=1 // loop_footer_branch
      %14 = sbr.rel target = $region3
    $region8: #{projection_head.2} parent=1 // loop_exit
      _
    %766 = vsyncpa [#allocation3], 1
    %s767 = scalar_lea.sflag [#allocation3], 1
    %768 = vsyncpa %s767, 1
    %769 = vsyncpa [#allocation5], 1

// kernel: projection_head.3
$region0: #{projection_head.3}
  #allocation0 [shape = 'u32[]', space=smem, size = 0x4, offset = 0x4, fixed_abs, tag = 'smem constant byte address 0x4 - core index']
  #allocation1 [shape = 'u32[144,128]{1,0:T(1,128)}', space=vmem, size = 0x12000, scoped, tag = 'internal scratch']
  %s0 = inlined_call_operand.vmem [shape: bf16[128,256], index: 0, kind: input, shape index: {}]
  %s1 = inlined_call_operand.vmem [shape: f32[1,256], index: 1, kind: input, shape index: {}]
  %s2 = inlined_call_operand.vmem [shape: f32[1,256], index: 2, kind: input, shape index: {}]
  %s3 = inlined_call_operand.vmem [shape: bf16[256,128], index: 3, kind: input, shape index: {}]
  %s4 = inlined_call_operand.hbm [shape: f32[128,128], index: 4, kind: output, shape index: {}]
  %s5 = sld [smem:[#allocation0]]
  $region26: #{projection_head.3} parent=0
    _
  %s7 = ssub.s32 1, %s5
  %s8 = scalar_select 0, %s7, %s5
  $region1: #{projection_head.3} parent=0
    #allocation2 [shape = 'u8[65536]{0}', space=vmem, size = 0x10000, scoped, tag = 'output window, operand 0, single buffered']
    #allocation3 [shape = 's32[1]{0}', space=sflag, size = 0x4, scoped, tag = 'scoped memory for projection_head.3']
    %9 = vsyncpa [#allocation3], 0
    // Predicated region
    $region2: #{projection_head.3} parent=1 // pred_check
      _
    $region3: #{projection_head.3} parent=1 // pred_check_branch
      %11 = sbr.rel (0) target = $region5
    $region4: #{projection_head.3} parent=1 // pred_region
      _
    $region5: #{projection_head.3} parent=1 // pred_fallthru
      _
    // Predicated region
    $region6: #{projection_head.3} parent=1 // pred_check
      _
    $region7: #{projection_head.3} parent=1 // pred_check_branch
      %13 = sbr.rel (0) target = $region9
    $region8: #{projection_head.3} parent=1 // pred_region
      _
    $region9: #{projection_head.3} parent=1 // pred_fallthru
      _
    // Predicated region
    $region10: #{projection_head.3} parent=1 // pred_check
      _
    $region11: #{projection_head.3} parent=1 // pred_check_branch
      %15 = sbr.rel (0) target = $region13
    $region12: #{projection_head.3} parent=1 // pred_region
      _
    $region13: #{projection_head.3} parent=1 // pred_fallthru
      _
    // Predicated region
    $region14: #{projection_head.3} parent=1 // pred_check
      _
    $region15: #{projection_head.3} parent=1 // pred_check_branch
      %17 = sbr.rel (0) target = $region17
    $region16: #{projection_head.3} parent=1 // pred_region
      _
    $region17: #{projection_head.3} parent=1 // pred_fallthru
      _
    %v19 = vld [vmem:[%s0] sm:$0xff]
    %v20 = vld [vmem:[%s0 + $0x8] sm:$0xff]
    %v21 = vld [vmem:[%s0 + $0x10] sm:$0xff]
    %v22 = vld [vmem:[%s0 + $0x18] sm:$0xff]
    %v23 = vld [vmem:[%s0 + $0x20] sm:$0xff]
    %v24 = vld [vmem:[%s0 + $0x28] sm:$0xff]
    %v25 = vld [vmem:[%s0 + $0x30] sm:$0xff]
    %v26 = vld [vmem:[%s0 + $0x38] sm:$0xff]
    %v27 = vld [vmem:[%s0 + $0x40] sm:$0xff]
    %v28 = vld [vmem:[%s0 + $0x48] sm:$0xff]
    %v29 = vld [vmem:[%s0 + $0x50] sm:$0xff]
    %v30 = vld [vmem:[%s0 + $0x58] sm:$0xff]
    %v31 = vld [vmem:[%s0 + $0x60] sm:$0xff]
    %v32 = vld [vmem:[%s0 + $0x68] sm:$0xff]
    %v33 = vld [vmem:[%s0 + $0x70] sm:$0xff]
    %v34 = vld [vmem:[%s0 + $0x78] sm:$0xff]
    %v35 = vld [vmem:[%s1] sm:$0x3]
    %v36 = vunpack.c.l.bf16 %v19
    %v37 = vunpack.c.h.bf16 %v19
    %v38 = vunpack.c.l.bf16 %v20
    %v39 = vunpack.c.h.bf16 %v20
    %v40 = vunpack.c.l.bf16 %v21
    %v41 = vunpack.c.h.bf16 %v21
    %v42 = vunpack.c.l.bf16 %v22
    %v43 = vunpack.c.h.bf16 %v22
    %v44 = vunpack.c.l.bf16 %v23
    %v45 = vunpack.c.h.bf16 %v23
    %v46 = vunpack.c.l.bf16 %v24
    %v47 = vunpack.c.h.bf16 %v24
    %v48 = vunpack.c.l.bf16 %v25
    %v49 = vunpack.c.h.bf16 %v25
    %v50 = vunpack.c.l.bf16 %v26
    %v51 = vunpack.c.h.bf16 %v26
    %v52 = vunpack.c.l.bf16 %v27
    %v53 = vunpack.c.h.bf16 %v27
    %v54 = vunpack.c.l.bf16 %v28
    %v55 = vunpack.c.h.bf16 %v28
    %v56 = vunpack.c.l.bf16 %v29
    %v57 = vunpack.c.h.bf16 %v29
    %v58 = vunpack.c.l.bf16 %v30
    %v59 = vunpack.c.h.bf16 %v30
    %v60 = vunpack.c.l.bf16 %v31
    %v61 = vunpack.c.h.bf16 %v31
    %v62 = vunpack.c.l.bf16 %v32
    %v63 = vunpack.c.h.bf16 %v32
    %v64 = vunpack.c.l.bf16 %v33
    %v65 = vunpack.c.h.bf16 %v33
    %v66 = vunpack.c.l.bf16 %v34
    %v67 = vunpack.c.h.bf16 %v34
    %v69 = vlaneseq
    %v70 = vshrl.u32 %v69, 7
    %v71 = vsub.s32 0, %v70
    %v72 = vrot.slane %v35, %v71
    %v73 = vlaneseq
    %v74 = vshrl.u32 %v73, 7
    %v75 = vsub.s32 1, %v74
    %v76 = vrot.slane %v35, %v75
    %v79 = vmul.f32 %v36, %v72
    %v80 = vmul.f32 %v37, %v76
    %v81 = vmul.f32 %v38, %v72
    %v82 = vmul.f32 %v39, %v76
    %v83 = vmul.f32 %v40, %v72
    %v84 = vmul.f32 %v41, %v76
    %v85 = vmul.f32 %v42, %v72
    %v86 = vmul.f32 %v43, %v76
    %v87 = vmul.f32 %v44, %v72
    %v88 = vmul.f32 %v45, %v76
    %v89 = vmul.f32 %v46, %v72
    %v90 = vmul.f32 %v47, %v76
    %v91 = vmul.f32 %v48, %v72
    %v92 = vmul.f32 %v49, %v76
    %v93 = vmul.f32 %v50, %v72
    %v94 = vmul.f32 %v51, %v76
    %v95 = vmul.f32 %v52, %v72
    %v96 = vmul.f32 %v53, %v76
    %v97 = vmul.f32 %v54, %v72
    %v98 = vmul.f32 %v55, %v76
    %v99 = vmul.f32 %v56, %v72
    %v100 = vmul.f32 %v57, %v76
    %v101 = vmul.f32 %v58, %v72
    %v102 = vmul.f32 %v59, %v76
    %v103 = vmul.f32 %v60, %v72
    %v104 = vmul.f32 %v61, %v76
    %v105 = vmul.f32 %v62, %v72
    %v106 = vmul.f32 %v63, %v76
    %v107 = vmul.f32 %v64, %v72
    %v108 = vmul.f32 %v65, %v76
    %v109 = vmul.f32 %v66, %v72
    %v110 = vmul.f32 %v67, %v76
    %v111 = vld [vmem:[%s2] sm:$0x3]
    %v113 = vlaneseq
    %v114 = vshrl.u32 %v113, 7
    %v115 = vsub.s32 0, %v114
    %v116 = vrot.slane %v111, %v115
    %v117 = vlaneseq
    %v118 = vshrl.u32 %v117, 7
    %v119 = vsub.s32 1, %v118
    %v120 = vrot.slane %v111, %v119
    %v123 = vadd.f32 %v79, %v116
    %v124 = vadd.f32 %v80, %v120
    %v125 = vadd.f32 %v81, %v116
    %v126 = vadd.f32 %v82, %v120
    %v127 = vadd.f32 %v83, %v116
    %v128 = vadd.f32 %v84, %v120
    %v129 = vadd.f32 %v85, %v116
    %v130 = vadd.f32 %v86, %v120
    %v131 = vadd.f32 %v87, %v116
    %v132 = vadd.f32 %v88, %v120
    %v133 = vadd.f32 %v89, %v116
    %v134 = vadd.f32 %v90, %v120
    %v135 = vadd.f32 %v91, %v116
    %v136 = vadd.f32 %v92, %v120
    %v137 = vadd.f32 %v93, %v116
    %v138 = vadd.f32 %v94, %v120
    %v139 = vadd.f32 %v95, %v116
    %v140 = vadd.f32 %v96, %v120
    %v141 = vadd.f32 %v97, %v116
    %v142 = vadd.f32 %v98, %v120
    %v143 = vadd.f32 %v99, %v116
    %v144 = vadd.f32 %v100, %v120
    %v145 = vadd.f32 %v101, %v116
    %v146 = vadd.f32 %v102, %v120
    %v147 = vadd.f32 %v103, %v116
    %v148 = vadd.f32 %v104, %v120
    %v149 = vadd.f32 %v105, %v116
    %v150 = vadd.f32 %v106, %v120
    %v151 = vadd.f32 %v107, %v116
    %v152 = vadd.f32 %v108, %v120
    %v153 = vadd.f32 %v109, %v116
    %v154 = vadd.f32 %v110, %v120
    %v155 = vmax.f32 %v123, 0.0
    %v156 = vmax.f32 %v124, 0.0
    %v157 = vmax.f32 %v125, 0.0
    %v158 = vmax.f32 %v126, 0.0
    %v159 = vmax.f32 %v127, 0.0
    %v160 = vmax.f32 %v128, 0.0
    %v161 = vmax.f32 %v129, 0.0
    %v162 = vmax.f32 %v130, 0.0
    %v163 = vmax.f32 %v131, 0.0
    %v164 = vmax.f32 %v132, 0.0
    %v165 = vmax.f32 %v133, 0.0
    %v166 = vmax.f32 %v134, 0.0
    %v167 = vmax.f32 %v135, 0.0
    %v168 = vmax.f32 %v136, 0.0
    %v169 = vmax.f32 %v137, 0.0
    %v170 = vmax.f32 %v138, 0.0
    %v171 = vmax.f32 %v139, 0.0
    %v172 = vmax.f32 %v140, 0.0
    %v173 = vmax.f32 %v141, 0.0
    %v174 = vmax.f32 %v142, 0.0
    %v175 = vmax.f32 %v143, 0.0
    %v176 = vmax.f32 %v144, 0.0
    %v177 = vmax.f32 %v145, 0.0
    %v178 = vmax.f32 %v146, 0.0
    %v179 = vmax.f32 %v147, 0.0
    %v180 = vmax.f32 %v148, 0.0
    %v181 = vmax.f32 %v149, 0.0
    %v182 = vmax.f32 %v150, 0.0
    %v183 = vmax.f32 %v151, 0.0
    %v184 = vmax.f32 %v152, 0.0
    %v185 = vmax.f32 %v153, 0.0
    %v186 = vmax.f32 %v154, 0.0
    %v187 = vpack.c.bf16 %v157, %v155
    %v188 = vpack.c.bf16 %v158, %v156
    %v189 = vpack.c.bf16 %v161, %v159
    %v190 = vpack.c.bf16 %v162, %v160
    %v191 = vpack.c.bf16 %v165, %v163
    %v192 = vpack.c.bf16 %v166, %v164
    %v193 = vpack.c.bf16 %v169, %v167
    %v194 = vpack.c.bf16 %v170, %v168
    %v195 = vpack.c.bf16 %v173, %v171
    %v196 = vpack.c.bf16 %v174, %v172
    %v197 = vpack.c.bf16 %v177, %v175
    %v198 = vpack.c.bf16 %v178, %v176
    %v199 = vpack.c.bf16 %v181, %v179
    %v200 = vpack.c.bf16 %v182, %v180
    %v201 = vpack.c.bf16 %v185, %v183
    %v202 = vpack.c.bf16 %v186, %v184
    %v203 = vld [vmem:[%s3] sm:$0xf]
    %v204 = vld [vmem:[%s3 + $0x4] sm:$0xf]
    %v205 = vld [vmem:[%s3 + $0x8] sm:$0xf]
    %v206 = vld [vmem:[%s3 + $0xc] sm:$0xf]
    %v207 = vld [vmem:[%s3 + $0x10] sm:$0xf]
    %v208 = vld [vmem:[%s3 + $0x14] sm:$0xf]
    %v209 = vld [vmem:[%s3 + $0x18] sm:$0xf]
    %v210 = vld [vmem:[%s3 + $0x1c] sm:$0xf]
    %v211 = vld [vmem:[%s3 + $0x20] sm:$0xf]
    %v212 = vld [vmem:[%s3 + $0x24] sm:$0xf]
    %v213 = vld [vmem:[%s3 + $0x28] sm:$0xf]
    %v214 = vld [vmem:[%s3 + $0x2c] sm:$0xf]
    %v215 = vld [vmem:[%s3 + $0x30] sm:$0xf]
    %v216 = vld [vmem:[%s3 + $0x34] sm:$0xf]
    %v217 = vld [vmem:[%s3 + $0x38] sm:$0xf]
    %v218 = vld [vmem:[%s3 + $0x3c] sm:$0xf]
    %v219 = vld [vmem:[%s3 + $0x40] sm:$0xf]
    %v220 = vld [vmem:[%s3 + $0x44] sm:$0xf]
    %v221 = vld [vmem:[%s3 + $0x48] sm:$0xf]
    %v222 = vld [vmem:[%s3 + $0x4c] sm:$0xf]
    %v223 = vld [vmem:[%s3 + $0x50] sm:$0xf]
    %v224 = vld [vmem:[%s3 + $0x54] sm:$0xf]
    %v225 = vld [vmem:[%s3 + $0x58] sm:$0xf]
    %v226 = vld [vmem:[%s3 + $0x5c] sm:$0xf]
    %v227 = vld [vmem:[%s3 + $0x60] sm:$0xf]
    %v228 = vld [vmem:[%s3 + $0x64] sm:$0xf]
    %v229 = vld [vmem:[%s3 + $0x68] sm:$0xf]
    %v230 = vld [vmem:[%s3 + $0x6c] sm:$0xf]
    %v231 = vld [vmem:[%s3 + $0x70] sm:$0xf]
    %v232 = vld [vmem:[%s3 + $0x74] sm:$0xf]
    %v233 = vld [vmem:[%s3 + $0x78] sm:$0xf]
    %v234 = vld [vmem:[%s3 + $0x7c] sm:$0xf]
    %v267 = vunpack.c.l.b16 %v203
    %v268 = vunpack.c.l.b16 %v204
    %v269 = vunpack.c.l.b16 %v205
    %v270 = vunpack.c.l.b16 %v206
    %v271 = vunpack.c.l.b16 %v207
    %v272 = vunpack.c.l.b16 %v208
    %v273 = vunpack.c.l.b16 %v209
    %v274 = vunpack.c.l.b16 %v210
    %v275 = vunpack.c.l.b16 %v211
    %v276 = vunpack.c.l.b16 %v212
    %v277 = vunpack.c.l.b16 %v213
    %v278 = vunpack.c.l.b16 %v214
    %v279 = vunpack.c.l.b16 %v215
    %v280 = vunpack.c.l.b16 %v216
    %v281 = vunpack.c.l.b16 %v217
    %v282 = vunpack.c.l.b16 %v218
    %v283 = vunpack.c.l.b16 %v219
    %v284 = vunpack.c.l.b16 %v220
    %v285 = vunpack.c.l.b16 %v221
    %v286 = vunpack.c.l.b16 %v222
    %v287 = vunpack.c.l.b16 %v223
    %v288 = vunpack.c.l.b16 %v224
    %v289 = vunpack.c.l.b16 %v225
    %v290 = vunpack.c.l.b16 %v226
    %v291 = vunpack.c.l.b16 %v227
    %v292 = vunpack.c.l.b16 %v228
    %v293 = vunpack.c.l.b16 %v229
    %v294 = vunpack.c.l.b16 %v230
    %v295 = vunpack.c.l.b16 %v231
    %v296 = vunpack.c.l.b16 %v232
    %v297 = vunpack.c.l.b16 %v233
    %v298 = vunpack.c.l.b16 %v234
    %v299 = vpack.c.b16 %v268, %v267
    %v300 = vpack.c.b16 %v270, %v269
    %v301 = vpack.c.b16 %v272, %v271
    %v302 = vpack.c.b16 %v274, %v273
    %v303 = vpack.c.b16 %v276, %v275
    %v304 = vpack.c.b16 %v278, %v277
    %v305 = vpack.c.b16 %v280, %v279
    %v306 = vpack.c.b16 %v282, %v281
    %v307 = vpack.c.b16 %v284, %v283
    %v308 = vpack.c.b16 %v286, %v285
    %v309 = vpack.c.b16 %v288, %v287
    %v310 = vpack.c.b16 %v290, %v289
    %v311 = vpack.c.b16 %v292, %v291
    %v312 = vpack.c.b16 %v294, %v293
    %v313 = vpack.c.b16 %v296, %v295
    %v314 = vpack.c.b16 %v298, %v297
    %331 = vmatprep.subr.bf16.mxu0 0
    %332 = vmatpush1.bf16.msra.mxu0 %v306
    %333 = vmatprep.subr.bf16.mxu0 0
    %334 = vmatpush1.bf16.msra.mxu0 %v305
    %335 = vmatprep.subr.bf16.mxu0 0
    %336 = vmatpush1.bf16.msra.mxu0 %v304
    %337 = vmatprep.subr.bf16.mxu0 0
    %338 = vmatpush1.bf16.msra.mxu0 %v303
    %339 = vmatprep.subr.bf16.mxu0 0
    %340 = vmatpush1.bf16.msra.mxu0 %v302
    %341 = vmatprep.subr.bf16.mxu0 0
    %342 = vmatpush1.bf16.msra.mxu0 %v301
    %343 = vmatprep.subr.bf16.mxu0 0
    %344 = vmatpush1.bf16.msra.mxu0 %v300
    %345 = vmatprep.subr.bf16.mxu0 0
    %346 = vmatpush1.bf16.msra.mxu0 %v299
    %347 = vmatprep.subr.bf16.mxu0 0
    %348 = vmatpush2.bf16.msra.mxu0 %v314
    %349 = vmatprep.subr.bf16.mxu0 0
    %350 = vmatpush2.bf16.msra.mxu0 %v313
    %351 = vmatprep.subr.bf16.mxu0 0
    %352 = vmatpush2.bf16.msra.mxu0 %v312
    %353 = vmatprep.subr.bf16.mxu0 0
    %354 = vmatpush2.bf16.msra.mxu0 %v311
    %355 = vmatprep.subr.bf16.mxu0 0
    %356 = vmatpush2.bf16.msra.mxu0 %v310
    %357 = vmatprep.subr.bf16.mxu0 0
    %358 = vmatpush2.bf16.msra.mxu0 %v309
    %359 = vmatprep.subr.bf16.mxu0 0
    %360 = vmatpush2.bf16.msra.mxu0 %v308
    %361 = vmatprep.subr.bf16.mxu0 0
    %362 = vmatpush2.bf16.msra.mxu0 %v307
    %363 = vmatprep.mubr.bf16.mxu0 %v188
    %364 = vmatmul.mubr.bf16.gmra.mxu0 %v187
    %v365 = vpop.f32.mrf.mxu0
    %v366 = vadd.f32 0.0, %v365
    %v367 = vpop.f32.mrf.mxu0
    %v368 = vpop.f32.mrf.mxu0
    %v369 = vadd.f32 0.0, %v368
    %v370 = vpop.f32.mrf.mxu0
    %371 = vmatprep.mubr.bf16.mxu0 %v190
    %372 = vmatmul.mubr.bf16.gmra.mxu0 %v189
    %v373 = vpop.f32.mrf.mxu0
    %v374 = vadd.f32 0.0, %v373
    %v375 = vpop.f32.mrf.mxu0
    %v376 = vpop.f32.mrf.mxu0
    %v377 = vadd.f32 0.0, %v376
    %v378 = vpop.f32.mrf.mxu0
    %379 = vmatprep.mubr.bf16.mxu0 %v192
    %380 = vmatmul.mubr.bf16.gmra.mxu0 %v191
    %v381 = vpop.f32.mrf.mxu0
    %v382 = vadd.f32 0.0, %v381
    %v383 = vpop.f32.mrf.mxu0
    %v384 = vpop.f32.mrf.mxu0
    %v385 = vadd.f32 0.0, %v384
    %v386 = vpop.f32.mrf.mxu0
    %387 = vmatprep.mubr.bf16.mxu0 %v194
    %388 = vmatmul.mubr.bf16.gmra.mxu0 %v193
    %v389 = vpop.f32.mrf.mxu0
    %v390 = vadd.f32 0.0, %v389
    %v391 = vpop.f32.mrf.mxu0
    %v392 = vpop.f32.mrf.mxu0
    %v393 = vadd.f32 0.0, %v392
    %v394 = vpop.f32.mrf.mxu0
    %395 = vmatprep.mubr.bf16.mxu0 %v196
    %396 = vmatmul.mubr.bf16.gmra.mxu0 %v195
    %v397 = vpop.f32.mrf.mxu0
    %v398 = vadd.f32 0.0, %v397
    %v399 = vpop.f32.mrf.mxu0
    %v400 = vpop.f32.mrf.mxu0
    %v401 = vadd.f32 0.0, %v400
    %v402 = vpop.f32.mrf.mxu0
    %403 = vmatprep.mubr.bf16.mxu0 %v198
    %404 = vmatmul.mubr.bf16.gmra.mxu0 %v197
    %v405 = vpop.f32.mrf.mxu0
    %v406 = vadd.f32 0.0, %v405
    %v407 = vpop.f32.mrf.mxu0
    %v408 = vpop.f32.mrf.mxu0
    %v409 = vadd.f32 0.0, %v408
    %v410 = vpop.f32.mrf.mxu0
    %411 = vmatprep.mubr.bf16.mxu0 %v200
    %412 = vmatmul.mubr.bf16.gmra.mxu0 %v199
    %v413 = vpop.f32.mrf.mxu0
    %v414 = vadd.f32 0.0, %v413
    %v415 = vpop.f32.mrf.mxu0
    %v416 = vpop.f32.mrf.mxu0
    %v417 = vadd.f32 0.0, %v416
    %v418 = vpop.f32.mrf.mxu0
    %419 = vmatprep.mubr.bf16.mxu0 %v202
    %420 = vmatmul.mubr.bf16.gmra.mxu0 %v201
    %v421 = vpop.f32.mrf.mxu0
    %v422 = vadd.f32 0.0, %v421
    %v423 = vpop.f32.mrf.mxu0
    %v424 = vpop.f32.mrf.mxu0
    %v425 = vadd.f32 0.0, %v424
    %v426 = vpop.f32.mrf.mxu0
    %427 = vdwg.mxu0
    %428 = vst [vmem:[#allocation2] sm:$0xff] %v366
    %429 = vst [vmem:[#allocation2 + $0x8] sm:$0xff] %v369
    %430 = vst [vmem:[#allocation2 + $0x10] sm:$0xff] %v374
    %431 = vst [vmem:[#allocation2 + $0x18] sm:$0xff] %v377
    %432 = vst [vmem:[#allocation2 + $0x20] sm:$0xff] %v382
    %433 = vst [vmem:[#allocation2 + $0x28] sm:$0xff] %v385
    %434 = vst [vmem:[#allocation2 + $0x30] sm:$0xff] %v390
    %435 = vst [vmem:[#allocation2 + $0x38] sm:$0xff] %v393
    %436 = vst [vmem:[#allocation2 + $0x40] sm:$0xff] %v398
    %437 = vst [vmem:[#allocation2 + $0x48] sm:$0xff] %v401
    %438 = vst [vmem:[#allocation2 + $0x50] sm:$0xff] %v406
    %439 = vst [vmem:[#allocation2 + $0x58] sm:$0xff] %v409
    %440 = vst [vmem:[#allocation2 + $0x60] sm:$0xff] %v414
    %441 = vst [vmem:[#allocation2 + $0x68] sm:$0xff] %v417
    %442 = vst [vmem:[#allocation2 + $0x70] sm:$0xff] %v422
    %443 = vst [vmem:[#allocation2 + $0x78] sm:$0xff] %v425
    // Predicated region
    $region18: #{projection_head.3} parent=1 // pred_check
      _
    $region19: #{projection_head.3} parent=1 // pred_check_branch
      %445 = sbr.rel (0) target = $region21
    $region20: #{projection_head.3} parent=1 // pred_region
      %s447 = ssub.s32 2048, 2048
      %448 = vsyncadd [#allocation3], %s447
      %s449 = sshll.u32 [#allocation2], 4
      %s450 = int_to_ptr.vmem [resolvable:$true] %s449
      %455 = dma.vmem_to_hbm [thread:$0]  %s450, 2048, %s4, [#allocation3], 128, 128, 8
    $region21: #{projection_head.3} parent=1 // pred_fallthru
      _
    // Predicated region
    $region22: #{projection_head.3} parent=1 // pred_check
      _
    $region23: #{projection_head.3} parent=1 // pred_check_branch
      %457 = sbr.rel (0) target = $region25
    $region24: #{projection_head.3} parent=1 // pred_region
      %458 = dma.done [#allocation3], 2048
    $region25: #{projection_head.3} parent=1 // pred_fallthru
      _
    %459 = vsyncpa [#allocation3], 1

</llo_original>
